<compile_context>
chip_gen: v7x
topology: tpu7x:2x2x1
jax: 0.10.0
libtpu: 0.0.40
codegen_flags: <defaults>
</compile_context>

<pallas_src>
import jax
import jax.numpy as jnp
from jax import lax
from jax.experimental import pallas as pl
from jax.experimental.pallas import tpu as pltpu


_OUT_LANES = 128  # lane-dense output width -> unmasked vector stores


def _contrastive_loss_kernel(inv_temp_ref, img_ref, txt_ref, out_ref,
                             m_ref, l_ref, diag_ref):
    # inv_temp_ref : (1, 1) f32 SMEM        -> 1 / temperature (precomputed)
    # img_ref      : (TR, D) VMEM           -> image rows of this row tile
    # txt_ref      : (TC, D) VMEM           -> text rows of this column tile
    # out_ref      : (TR, 128) f32 VMEM     -> per-row CE loss bcast over lanes
    # m_ref/l_ref/diag_ref : (TR, 1) f32 VMEM scratch
    i = pl.program_id(0)
    j = pl.program_id(1)
    tile_r = img_ref.shape[0]
    tile_c = txt_ref.shape[0]

    @pl.when(j == 0)
    def _init():
        m_ref[...] = jnp.full_like(m_ref, -jnp.inf)
        l_ref[...] = jnp.zeros_like(l_ref)
        diag_ref[...] = jnp.zeros_like(diag_ref)

    # Logits tile (TR, TC) on the MXU: contract the last (lane) dim of both
    # operands -> no transpose materialized; accumulate in f32.
    s = lax.dot_general(
        img_ref[...], txt_ref[...],
        dimension_numbers=(((1,), (1,)), ((), ())),
        preferred_element_type=jnp.float32,
    )
    # Temperature folded into the already-f32 logits tile (single VPU pass,
    # keeps operands in their native dtype for the MXU).
    s = s * inv_temp_ref[0, 0]

    # Diagonal ("correct pair") logit — only on the column step(s) whose
    # column range overlaps this row tile's diagonal block.
    row_start = i * tile_r
    col_start = j * tile_c

    @pl.when((col_start < row_start + tile_r) & (row_start < col_start + tile_c))
    def _grab_diag():
        row_ids = row_start + lax.broadcasted_iota(jnp.int32, (tile_r, tile_c), 0)
        col_ids = col_start + lax.broadcasted_iota(jnp.int32, (tile_r, tile_c), 1)
        hit = row_ids == col_ids
        diag_ref[...] += jnp.sum(jnp.where(hit, s, 0.0), axis=-1, keepdims=True)

    # Online (numerically stable) logsumexp update across column tiles.
    m_prev = m_ref[...]
    m_new = jnp.maximum(m_prev, jnp.max(s, axis=-1, keepdims=True))
    alpha = jnp.exp(m_prev - m_new)                    # 0 on the first step
    l_ref[...] = alpha * l_ref[...] + jnp.sum(jnp.exp(s - m_new), axis=-1,
                                              keepdims=True)
    m_ref[...] = m_new

    @pl.when(j == pl.num_programs(1) - 1)
    def _finalize():
        lse = m_ref[...] + jnp.log(l_ref[...])
        loss = lse - diag_ref[...]                     # (TR, 1) per-row CE loss
        # Broadcast across 128 lanes -> unmasked, lane-dense stores.
        out_ref[...] = jnp.broadcast_to(loss, (tile_r, _OUT_LANES))


def _pick_tile(b, target):
    """Largest tile <= target that divides b (prefer sublane-aligned sizes)."""
    t = min(target, b)
    if b % t == 0:
        return t
    for cand in range(t, 0, -1):
        if b % cand == 0 and (cand % 8 == 0 or cand == b):
            return cand
    return b


def contrastive_loss(image_emb, text_emb, temperature, *,
                     tile_r=None, tile_c=None, compute_dtype=None):
    """image_emb, text_emb: (B, D); temperature: scalar. Returns scalar f32 loss."""
    B, D = image_emb.shape
    assert text_emb.shape == (B, D)

    # Optional bf16 cast (halves the dominant HBM stream, native-rate MXU).
    # Off by default so the f32 reference matches to tight tolerance.
    if compute_dtype is not None:
        image_emb = image_emb.astype(compute_dtype)
        text_emb = text_emb.astype(compute_dtype)

    # Big tiles: text_emb is re-read from HBM only B/tile_r times (the dominant
    # HBM stream at CLIP-scale B) and grid-step overhead is amortized.  At
    # large B, nr = B/512 stays >= 2 and even, so v7x megacore can shard rows.
    if tile_r is None:
        tile_r = _pick_tile(B, 512)
    if tile_c is None:
        tile_c = _pick_tile(B, 2048)
    tile_r = min(tile_r, B)
    tile_c = min(tile_c, B)
    assert B % tile_r == 0 and B % tile_c == 0, "batch must divide tile sizes"
    # TODO(synk): non-divisible batches need padding plus masking of the padded
    # columns to -inf before the online softmax.
    nr, nc = B // tile_r, B // tile_c

    inv_temp = (1.0 / jnp.asarray(temperature, jnp.float32)).reshape(1, 1)

    # Explicit VMEM budget: double-buffered input tiles + f32 s-tile temps +
    # double-buffered output + accumulators.  Clamped to [32 MiB, 56 MiB] so
    # bigger-than-default-scoped tiles compile on v5e/v6e yet stay safely under
    # v7x's 64 MiB physical VMEM.
    itemsize = jnp.dtype(image_emb.dtype).itemsize
    est = (2 * (tile_r * D + tile_c * D) * itemsize
           + 3 * tile_r * tile_c * 4
           + 2 * tile_r * _OUT_LANES * 4
           + 8 * tile_r * 4)
    vmem_limit = int(min(max(est + (4 << 20), 32 << 20), 56 << 20))

    per_row = pl.pallas_call(
        _contrastive_loss_kernel,
        out_shape=jax.ShapeDtypeStruct((B, _OUT_LANES), jnp.float32),
        grid=(nr, nc),
        in_specs=[
            pl.BlockSpec(memory_space=pltpu.MemorySpace.SMEM),   # 1/temperature
            pl.BlockSpec((tile_r, D), lambda i, j: (i, 0)),      # image row tile
            pl.BlockSpec((tile_c, D), lambda i, j: (j, 0)),      # text col tile
        ],
        out_specs=pl.BlockSpec((tile_r, _OUT_LANES), lambda i, j: (i, 0)),
        scratch_shapes=[
            pltpu.VMEM((tile_r, 1), jnp.float32),   # running max
            pltpu.VMEM((tile_r, 1), jnp.float32),   # running sum-exp
            pltpu.VMEM((tile_r, 1), jnp.float32),   # diagonal logit
        ],
        compiler_params=pltpu.CompilerParams(
            dimension_semantics=("parallel", "arbitrary"),
            vmem_limit_bytes=vmem_limit),
    )(inv_temp, image_emb, text_emb)

    # Per-row loss lives (replicated) along lanes; tiny O(B) mean in the wrapper
    # keeps the row-tile grid axis purely parallel.
    return jnp.mean(per_row[:, 0])


def _reference_loss(image_emb, text_emb, temperature):
    # Pure-JAX reference mirroring torch.matmul + nn.CrossEntropyLoss (mean).
    logits = image_emb.astype(jnp.float32) @ text_emb.astype(jnp.float32).T / temperature
    lse = jax.scipy.special.logsumexp(logits, axis=-1)
    diag = jnp.diagonal(logits)
    return jnp.mean(lse - diag)


if __name__ == "__main__":
    B, D = 8, 32
    key = jax.random.PRNGKey(0)
    k_img, k_txt = jax.random.split(key)

    # Deterministic synthetic embeddings (L2-normalized, as typical for CLIP).
    image_emb = jax.random.normal(k_img, (B, D), dtype=jnp.float32)
    text_emb = jax.random.normal(k_txt, (B, D), dtype=jnp.float32)
    image_emb = image_emb / jnp.linalg.norm(image_emb, axis=-1, keepdims=True)
    text_emb = text_emb / jnp.linalg.norm(text_emb, axis=-1, keepdims=True)

    # nn.Parameter(torch.tensor(0.2)) -> deterministic scalar parameter.
    temperature = jnp.float32(0.2)

    loss = contrastive_loss(image_emb, text_emb, temperature)
    loss = jax.block_until_ready(loss)

    ref = _reference_loss(image_emb, text_emb, temperature)
    assert jnp.allclose(loss, ref, rtol=1e-5, atol=1e-5), (loss, ref)

    print("KERNEL_OK")
</pallas_src>

<mosaic_0001>
module attributes {stable_mosaic.version = 11 : i64} {
  func.func @_contrastive_loss_kernel(%arg0: i32, %arg1: i32, %arg2: memref<1x1xf32, #tpu.memory_space<smem>>, %arg3: memref<8x32xf32, #tpu.memory_space<vmem>>, %arg4: memref<8x32xf32, #tpu.memory_space<vmem>>, %arg5: memref<8x128xf32, #tpu.memory_space<vmem>>, %arg6: memref<8x1xf32, #tpu.memory_space<vmem>>, %arg7: memref<8x1xf32, #tpu.memory_space<vmem>>, %arg8: memref<8x1xf32, #tpu.memory_space<vmem>>) attributes {dimension_semantics = [#tpu.dimension_semantics<parallel>, #tpu.dimension_semantics<arbitrary>], iteration_bounds = array<i64: 1, 1>, scalar_prefetch = 0 : i64, scratch_operands = 3 : i64, tpu.core_type = #tpu.core_type<tc>, window_params = [{transform_indices = @transform_0, window_bounds = array<i64: 1, 1>}, {transform_indices = @transform_1, window_bounds = array<i64: 8, 32>}, {transform_indices = @transform_2, window_bounds = array<i64: 8, 32>}, {transform_indices = @transform_3, window_bounds = array<i64: 8, 128>}]} {
    %c0_i32 = arith.constant 0 : i32
    %0 = arith.cmpi eq, %arg1, %c0_i32 : i32
    %1 = arith.extui %0 : i1 to i32
    %c0_i32_0 = arith.constant 0 : i32
    %2 = arith.cmpi ne, %1, %c0_i32_0 : i32
    scf.if %2 {
      %cst_22 = arith.constant 0xFF800000 : f32
      %37 = vector.broadcast %cst_22 : f32 to vector<8x1xf32>
      %c0_23 = arith.constant 0 : index
      %c0_24 = arith.constant 0 : index
      %38 = vector.load %arg6[%c0_23, %c0_24] : memref<8x1xf32, #tpu.memory_space<vmem>>, vector<8x1xf32>
      tpu.vector_store %arg6[%c0_23, %c0_24], %37 {strides = array<i32>} : memref<8x1xf32, #tpu.memory_space<vmem>>, vector<8x1xf32>,
      %cst_25 = arith.constant 0.000000e+00 : f32
      %39 = vector.broadcast %cst_25 : f32 to vector<8x1xf32>
      %c0_26 = arith.constant 0 : index
      %c0_27 = arith.constant 0 : index
      %40 = vector.load %arg7[%c0_26, %c0_27] : memref<8x1xf32, #tpu.memory_space<vmem>>, vector<8x1xf32>
      tpu.vector_store %arg7[%c0_26, %c0_27], %39 {strides = array<i32>} : memref<8x1xf32, #tpu.memory_space<vmem>>, vector<8x1xf32>,
      %cst_28 = arith.constant 0.000000e+00 : f32
      %41 = vector.broadcast %cst_28 : f32 to vector<8x1xf32>
      %c0_29 = arith.constant 0 : index
      %c0_30 = arith.constant 0 : index
      %42 = vector.load %arg8[%c0_29, %c0_30] : memref<8x1xf32, #tpu.memory_space<vmem>>, vector<8x1xf32>
      tpu.vector_store %arg8[%c0_29, %c0_30], %41 {strides = array<i32>} : memref<8x1xf32, #tpu.memory_space<vmem>>, vector<8x1xf32>,
    } else {
    }
    %c0 = arith.constant 0 : index
    %c0_1 = arith.constant 0 : index
    %3 = vector.load %arg3[%c0, %c0_1] : memref<8x32xf32, #tpu.memory_space<vmem>>, vector<8x32xf32>
    %c0_2 = arith.constant 0 : index
    %c0_3 = arith.constant 0 : index
    %4 = vector.load %arg4[%c0_2, %c0_3] : memref<8x32xf32, #tpu.memory_space<vmem>>, vector<8x32xf32>
    %cst = arith.constant dense<0.000000e+00> : vector<8x8xf32>
    %5 = tpu.matmul %3, %4, %cst {dimension_numbers = #tpu.dot_dimension_numbers<[1], [1], [0], [0], [0, 0, 1, 0], [], []>} : vector<8x32xf32>, vector<8x32xf32>, vector<8x8xf32> -> vector<8x8xf32>
    %c0_4 = arith.constant 0 : index
    %c0_5 = arith.constant 0 : index
    %6 = memref.load %arg2[%c0_4, %c0_5] : memref<1x1xf32, #tpu.memory_space<smem>>
    %7 = vector.broadcast %6 : f32 to vector<8x8xf32>
    %8 = arith.mulf %5, %7 : vector<8x8xf32>
    %c8_i32 = arith.constant 8 : i32
    %9 = arith.muli %arg0, %c8_i32 : i32
    %c8_i32_6 = arith.constant 8 : i32
    %10 = arith.muli %arg1, %c8_i32_6 : i32
    %c8_i32_7 = arith.constant 8 : i32
    %11 = arith.addi %9, %c8_i32_7 : i32
    %12 = arith.cmpi slt, %10, %11 : i32
    %c8_i32_8 = arith.constant 8 : i32
    %13 = arith.addi %10, %c8_i32_8 : i32
    %14 = arith.cmpi slt, %9, %13 : i32
    %15 = arith.andi %12, %14 : i1
    %16 = arith.extui %15 : i1 to i32
    %c0_i32_9 = arith.constant 0 : i32
    %17 = arith.cmpi ne, %16, %c0_i32_9 : i32
    scf.if %17 {
      %37 = tpu.iota {dimensions = array<i32: 0>} : vector<8x8xi32>
      %38 = vector.broadcast %9 : i32 to vector<8x8xi32>
      %39 = arith.addi %38, %37 : vector<8x8xi32>
      %40 = tpu.iota {dimensions = array<i32: 1>} : vector<8x8xi32>
      %41 = vector.broadcast %10 : i32 to vector<8x8xi32>
      %42 = arith.addi %41, %40 : vector<8x8xi32>
      %43 = arith.cmpi eq, %39, %42 : vector<8x8xi32>
      %c0_22 = arith.constant 0 : index
      %c0_23 = arith.constant 0 : index
      %44 = vector.load %arg8[%c0_22, %c0_23] : memref<8x1xf32, #tpu.memory_space<vmem>>, vector<8x1xf32>
      %cst_24 = arith.constant 0.000000e+00 : f32
      %45 = vector.broadcast %cst_24 : f32 to vector<8x8xf32>
      %46 = arith.select %43, %8, %45 : vector<8x8xi1>, vector<8x8xf32>
      %cst_25 = arith.constant dense<0.000000e+00> : vector<8xf32>
      %47 = vector.multi_reduction <add>, %46, %cst_25 [1] : vector<8x8xf32> to vector<8xf32>
      %48 = vector.shape_cast %47 : vector<8xf32> to vector<8x1xf32>
      %49 = arith.addf %44, %48 : vector<8x1xf32>
      %c0_26 = arith.constant 0 : index
      %c0_27 = arith.constant 0 : index
      %50 = vector.load %arg8[%c0_26, %c0_27] : memref<8x1xf32, #tpu.memory_space<vmem>>, vector<8x1xf32>
      tpu.vector_store %arg8[%c0_26, %c0_27], %49 {strides = array<i32>} : memref<8x1xf32, #tpu.memory_space<vmem>>, vector<8x1xf32>,
    } else {
    }
    %c0_10 = arith.constant 0 : index
    %c0_11 = arith.constant 0 : index
    %18 = vector.load %arg6[%c0_10, %c0_11] : memref<8x1xf32, #tpu.memory_space<vmem>>, vector<8x1xf32>
    %cst_12 = arith.constant dense<0xFF800000> : vector<8xf32>
    %19 = vector.multi_reduction <maximumf>, %8, %cst_12 [1] : vector<8x8xf32> to vector<8xf32>
    %20 = vector.shape_cast %19 : vector<8xf32> to vector<8x1xf32>
    %21 = arith.maximumf %18, %20 : vector<8x1xf32>
    %22 = arith.subf %18, %21 : vector<8x1xf32>
    %23 = math.exp %22 : vector<8x1xf32>
    %c0_13 = arith.constant 0 : index
    %c0_14 = arith.constant 0 : index
    %24 = vector.load %arg7[%c0_13, %c0_14] : memref<8x1xf32, #tpu.memory_space<vmem>>, vector<8x1xf32>
    %25 = arith.mulf %23, %24 : vector<8x1xf32>
    %26 = vector.broadcast %21 : vector<8x1xf32> to vector<8x8xf32>
    %27 = arith.subf %8, %26 : vector<8x8xf32>
    %28 = math.exp %27 : vector<8x8xf32>
    %cst_15 = arith.constant dense<0.000000e+00> : vector<8xf32>
    %29 = vector.multi_reduction <add>, %28, %cst_15 [1] : vector<8x8xf32> to vector<8xf32>
    %30 = vector.shape_cast %29 : vector<8xf32> to vector<8x1xf32>
    %31 = arith.addf %25, %30 : vector<8x1xf32>
    %c0_16 = arith.constant 0 : index
    %c0_17 = arith.constant 0 : index
    %32 = vector.load %arg7[%c0_16, %c0_17] : memref<8x1xf32, #tpu.memory_space<vmem>>, vector<8x1xf32>
    tpu.vector_store %arg7[%c0_16, %c0_17], %31 {strides = array<i32>} : memref<8x1xf32, #tpu.memory_space<vmem>>, vector<8x1xf32>,
    %c0_18 = arith.constant 0 : index
    %c0_19 = arith.constant 0 : index
    %33 = vector.load %arg6[%c0_18, %c0_19] : memref<8x1xf32, #tpu.memory_space<vmem>>, vector<8x1xf32>
    tpu.vector_store %arg6[%c0_18, %c0_19], %21 {strides = array<i32>} : memref<8x1xf32, #tpu.memory_space<vmem>>, vector<8x1xf32>,
    %c0_i32_20 = arith.constant 0 : i32
    %34 = arith.cmpi eq, %arg1, %c0_i32_20 : i32
    %35 = arith.extui %34 : i1 to i32
    %c0_i32_21 = arith.constant 0 : i32
    %36 = arith.cmpi ne, %35, %c0_i32_21 : i32
    scf.if %36 {
      %c0_22 = arith.constant 0 : index
      %c0_23 = arith.constant 0 : index
      %37 = vector.load %arg6[%c0_22, %c0_23] : memref<8x1xf32, #tpu.memory_space<vmem>>, vector<8x1xf32>
      %c0_24 = arith.constant 0 : index
      %c0_25 = arith.constant 0 : index
      %38 = vector.load %arg7[%c0_24, %c0_25] : memref<8x1xf32, #tpu.memory_space<vmem>>, vector<8x1xf32>
      %39 = math.log %38 : vector<8x1xf32>
      %40 = arith.addf %37, %39 : vector<8x1xf32>
      %c0_26 = arith.constant 0 : index
      %c0_27 = arith.constant 0 : index
      %41 = vector.load %arg8[%c0_26, %c0_27] : memref<8x1xf32, #tpu.memory_space<vmem>>, vector<8x1xf32>
      %42 = arith.subf %40, %41 : vector<8x1xf32>
      %43 = vector.shape_cast %42 : vector<8x1xf32> to vector<8x1xf32>
      %44 = vector.broadcast %43 : vector<8x1xf32> to vector<8x128xf32>
      %c0_28 = arith.constant 0 : index
      %c0_29 = arith.constant 0 : index
      %45 = vector.load %arg5[%c0_28, %c0_29] : memref<8x128xf32, #tpu.memory_space<vmem>>, vector<8x128xf32>
      tpu.vector_store %arg5[%c0_28, %c0_29], %44 {strides = array<i32>} : memref<8x128xf32, #tpu.memory_space<vmem>>, vector<8x128xf32>,
    } else {
    }
    return
  }
  func.func @transform_0(%arg0: i32, %arg1: i32) -> (i32, i32) {
    %c0_i32 = arith.constant 0 : i32
    %c0_i32_0 = arith.constant 0 : i32
    %c0_i32_1 = arith.constant 0 : i32
    return %c0_i32, %c0_i32_0 : i32, i32
  }
  func.func @transform_1(%arg0: i32, %arg1: i32) -> (i32, i32) {
    %c0_i32 = arith.constant 0 : i32
    %c0_i32_0 = arith.constant 0 : i32
    return %arg0, %c0_i32 : i32, i32
  }
  func.func @transform_2(%arg0: i32, %arg1: i32) -> (i32, i32) {
    %c0_i32 = arith.constant 0 : i32
    %c0_i32_0 = arith.constant 0 : i32
    return %arg1, %c0_i32 : i32, i32
  }
  func.func @transform_3(%arg0: i32, %arg1: i32) -> (i32, i32) {
    %c0_i32 = arith.constant 0 : i32
    %c0_i32_0 = arith.constant 0 : i32
    return %arg0, %c0_i32 : i32, i32
  }
}

</mosaic_0001>

<llo_original>
// kernel: tpu_custom_call.1
$region0: #{tpu_custom_call.1}
  #allocation0 [shape = 'u32[]', space=smem, size = 0x4, offset = 0x4, fixed_abs, tag = 'smem constant byte address 0x4 - core index']
  #allocation1 [shape = 'u32[144,128]{1,0:T(1,128)}', space=vmem, size = 0x12000, scoped, tag = 'internal scratch']
  #allocation2 [shape = 'f32[8,1]{1,0:T(8,128)}', space=vmem, size = 0x1000, scoped, tag = 'scratch operand']
  #allocation3 [shape = 'f32[8,1]{1,0:T(8,128)}', space=vmem, size = 0x1000, scoped, tag = 'scratch operand']
  #allocation4 [shape = 'f32[8,1]{1,0:T(8,128)}', space=vmem, size = 0x1000, scoped, tag = 'scratch operand']
  #allocation5 [shape = 'f32[1,1]{1,0:T(1,128)S(6)}', space=smem, size = 0x200, scoped, tag = 'scoped memory for tpu_custom_call.1']
  %s0 = inlined_call_operand.<no memory space> [shape: f32[1,1], index: 0, kind: input, shape index: {}]
  %s1 = inlined_call_operand.hbm [shape: f32[8,32], index: 1, kind: input, shape index: {}]
  %s2 = inlined_call_operand.hbm [shape: f32[8,32], index: 2, kind: input, shape index: {}]
  %s3 = inlined_call_operand.hbm [shape: f32[8,128], index: 3, kind: output, shape index: {}]
  %s4 = sld [smem:[#allocation0]]
  $region42: #{tpu_custom_call.1} parent=0
    _
  %s6 = ssub.s32 1, %s4
  %s7 = scalar_select 0, %s6, %s4
  %8 = sst [smem:[#allocation5]] %s0
  $region1: #{tpu_custom_call.1} parent=0
    #allocation6 [shape = 'u8[4096]{0}', space=vmem, size = 0x1000, scoped, tag = 'input window, operand 1, single buffered']
    #allocation7 [shape = 's32[1]{0}', space=sflag, size = 0x4, scoped, tag = 'scoped memory for tpu_custom_call.1']
    #allocation8 [shape = 's32[1]{0}', space=sflag, size = 0x4, scoped, tag = 'scoped memory for tpu_custom_call.1']
    #allocation9 [shape = 'u8[4096]{0}', space=vmem, size = 0x1000, scoped, tag = 'input window, operand 2, single buffered']
    #allocation10 [shape = 's32[1]{0}', space=sflag, size = 0x4, scoped, tag = 'scoped memory for tpu_custom_call.1']
    #allocation11 [shape = 'u8[4096]{0}', space=vmem, size = 0x1000, scoped, tag = 'output window, operand 0, single buffered']
    %9 = vsyncpa [#allocation7], 0
    %10 = vsyncpa [#allocation10], 0
    %11 = vsyncpa [#allocation8], 0
    // Predicated region
    $region2: #{tpu_custom_call.1} parent=1 // pred_check
      _
    $region3: #{tpu_custom_call.1} parent=1 // pred_check_branch
      %13 = sbr.rel (0) target = $region5
    $region4: #{tpu_custom_call.1} parent=1 // pred_region
      _
    $region5: #{tpu_custom_call.1} parent=1 // pred_fallthru
      _
    // Predicated region
    $region6: #{tpu_custom_call.1} parent=1 // pred_check
      _
    $region7: #{tpu_custom_call.1} parent=1 // pred_check_branch
      %15 = sbr.rel (0) target = $region9
    $region8: #{tpu_custom_call.1} parent=1 // pred_region
      %s17 = ssub.s32 128, 128
      %18 = vsyncadd [#allocation7], %s17
      %s20 = sshll.u32 [#allocation6], 4
      %s21 = int_to_ptr.vmem [resolvable:$true] %s20
      %23 = dma.hbm_to_vmem [thread:$0]  %s1, 128, %s21, [#allocation7]
    $region9: #{tpu_custom_call.1} parent=1 // pred_fallthru
      _
    // Predicated region
    $region10: #{tpu_custom_call.1} parent=1 // pred_check
      _
    $region11: #{tpu_custom_call.1} parent=1 // pred_check_branch
      %25 = sbr.rel (0) target = $region13
    $region12: #{tpu_custom_call.1} parent=1 // pred_region
      %s27 = ssub.s32 128, 128
      %28 = vsyncadd [#allocation10], %s27
      %s30 = sshll.u32 [#allocation9], 4
      %s31 = int_to_ptr.vmem [resolvable:$true] %s30
      %33 = dma.hbm_to_vmem [thread:$0]  %s2, 128, %s31, [#allocation10]
    $region13: #{tpu_custom_call.1} parent=1 // pred_fallthru
      _
    // Predicated region
    $region14: #{tpu_custom_call.1} parent=1 // pred_check
      _
    $region15: #{tpu_custom_call.1} parent=1 // pred_check_branch
      %35 = sbr.rel (0) target = $region17
    $region16: #{tpu_custom_call.1} parent=1 // pred_region
      %36 = dma.done [#allocation7], 128
    $region17: #{tpu_custom_call.1} parent=1 // pred_fallthru
      _
    // Predicated region
    $region18: #{tpu_custom_call.1} parent=1 // pred_check
      _
    $region19: #{tpu_custom_call.1} parent=1 // pred_check_branch
      %38 = sbr.rel (0) target = $region21
    $region20: #{tpu_custom_call.1} parent=1 // pred_region
      %39 = dma.done [#allocation10], 128
    $region21: #{tpu_custom_call.1} parent=1 // pred_fallthru
      _
    %p40 = scmp.eq.s32.totalorder 0, 0
    // Predicated region
    $region22: #{tpu_custom_call.1} parent=1 // pred_check
      %p41 = pneg %p40
    $region23: #{tpu_custom_call.1} parent=1 // pred_check_branch
      %43 = sbr.rel (%p41) target = $region25
    $region24: #{tpu_custom_call.1} parent=1 // pred_region
      %vm44 = vcmask 7168
      %45 = vst.msk [vmem:[#allocation2] sm:$0xff] %vm44, -inf
      %46 = vst.msk [vmem:[#allocation3] sm:$0xff] %vm44, 0.0
      %47 = vst.msk [vmem:[#allocation4] sm:$0xff] %vm44, 0.0
    $region25: #{tpu_custom_call.1} parent=1 // pred_fallthru
      _
    %v48 = vld [vmem:[#allocation6] sm:$0xff]
    %v49 = vld [vmem:[#allocation9] sm:$0xff]
    %vm50 = vcmask 261120
    %v52 = vsel %vm50, %v48, 0
    %v55 = vsel %vm50, %v49, 0
    %57 = vmatprep.subr.mxu0 0.0
    %58 = vmatpush1.xpose.msra.mxu0 %v55
    %59 = vmatprep.subr.mxu0 0.0
    %60 = vmatpush1.xpose.msra.mxu0 0.0
    %61 = vmatprep.subr.mxu0 0.0
    %62 = vmatpush1.xpose.msra.mxu0 0.0
    %63 = vmatprep.subr.mxu0 0.0
    %64 = vmatpush1.xpose.msra.mxu0 0.0
    %65 = vmatprep.subr.mxu0 0.0
    %66 = vmatpush1.xpose.msra.mxu0 0.0
    %67 = vmatprep.subr.mxu0 0.0
    %68 = vmatpush1.xpose.msra.mxu0 0.0
    %69 = vmatprep.subr.mxu0 0.0
    %70 = vmatpush1.xpose.msra.mxu0 0.0
    %71 = vmatprep.subr.mxu0 0.0
    %72 = vmatpush1.xpose.msra.mxu0 0.0
    %73 = vmatprep.subr.mxu0 0.0
    %74 = vmatpush1.xpose.msra.mxu0 0.0
    %75 = vmatprep.subr.mxu0 0.0
    %76 = vmatpush1.xpose.msra.mxu0 0.0
    %77 = vmatprep.subr.mxu0 0.0
    %78 = vmatpush1.xpose.msra.mxu0 0.0
    %79 = vmatprep.subr.mxu0 0.0
    %80 = vmatpush1.xpose.msra.mxu0 0.0
    %81 = vmatprep.subr.mxu0 0.0
    %82 = vmatpush1.xpose.msra.mxu0 0.0
    %83 = vmatprep.subr.mxu0 0.0
    %84 = vmatpush1.xpose.msra.mxu0 0.0
    %85 = vmatprep.subr.mxu0 0.0
    %86 = vmatpush1.xpose.msra.mxu0 0.0
    %87 = vmatprep.subr.mxu0 0.0
    %88 = vmatpush1.xpose.msra.mxu0 0.0
    %89 = vmatprep.subr.mxu0 0.0
    %90 = vmatpush1.xpose.msra.mxu0 0.0
    %91 = vmatprep.subr.mxu0 0.0
    %92 = vmatpush1.xpose.msra.mxu0 0.0
    %93 = vmatprep.subr.mxu0 0.0
    %94 = vmatpush1.xpose.msra.mxu0 0.0
    %95 = vmatprep.subr.mxu0 0.0
    %96 = vmatpush1.xpose.msra.mxu0 0.0
    %97 = vmatprep.subr.mxu0 0.0
    %98 = vmatpush1.xpose.msra.mxu0 0.0
    %99 = vmatprep.subr.mxu0 0.0
    %100 = vmatpush1.xpose.msra.mxu0 0.0
    %101 = vmatprep.subr.mxu0 0.0
    %102 = vmatpush1.xpose.msra.mxu0 0.0
    %103 = vmatprep.subr.mxu0 0.0
    %104 = vmatpush1.xpose.msra.mxu0 0.0
    %105 = vmatprep.subr.mxu0 0.0
    %106 = vmatpush1.xpose.msra.mxu0 0.0
    %107 = vmatprep.subr.mxu0 0.0
    %108 = vmatpush1.xpose.msra.mxu0 0.0
    %109 = vmatprep.subr.mxu0 0.0
    %110 = vmatpush1.xpose.msra.mxu0 0.0
    %111 = vmatprep.subr.mxu0 0.0
    %112 = vmatpush1.xpose.msra.mxu0 0.0
    %113 = vmatprep.subr.mxu0 0.0
    %114 = vmatpush1.xpose.msra.mxu0 0.0
    %115 = vmatprep.subr.mxu0 0.0
    %116 = vmatpush1.xpose.msra.mxu0 0.0
    %117 = vmatprep.subr.mxu0 0.0
    %118 = vmatpush1.xpose.msra.mxu0 0.0
    %119 = vmatprep.subr.mxu0 0.0
    %120 = vmatpush1.xpose.msra.mxu0 0.0
    %121 = vmatprep.mubr.f32.mxu0 0.0
    %122 = vmatmul.mubr.f32.gmra.mrb[0].mxu0 %v52
    %v123 = vpop.f32.mrb[0].mxu0
    %v124 = vadd.f32 0.0, %v123
    %v125 = vpop.f32.mrb[0].mxu0
    %126 = vdwg.mxu0
    %s127 = sld [smem:[#allocation5]]
    %v128 = vstv %s127
    %v129 = vmul.f32 %v124, %v128
    %s130 = smul.u32 0, 8
    %s131 = smul.u32 0, 8
    %s132 = sadd.s32 %s130, 8
    %p133 = scmp.lt.s32.totalorder %s131, %s132
    %s134 = sadd.s32 %s131, 8
    %p135 = scmp.lt.s32.totalorder %s130, %s134
    %p136 = pnand %p133, %p135
    %p137 = pneg %p136
    // Predicated region
    $region26: #{tpu_custom_call.1} parent=1 // pred_check
      _
    $region27: #{tpu_custom_call.1} parent=1 // pred_check_branch
      %139 = sbr.rel (%p136) target = $region29
    $region28: #{tpu_custom_call.1} parent=1 // pred_region
      %v140 = vlaneseq
      %v141 = vshrl.u32 %v140, 7
      %v142 = vstv %s130
      %v143 = vadd.s32 %v142, %v141
      %v144 = vlaneseq
      %v145 = vand.u32 %v144, 127
      %v146 = vstv %s131
      %v147 = vadd.s32 %v146, %v145
      %vm148 = vcmp.eq.s32.totalorder %v143, %v147
      %v149 = vld [vmem:[#allocation4] sm:$0xff]
      %v150 = vsel %vm148, %v129, 0.0
      %vm151 = vcmask 64512
      %v152 = vsel %vm151, %v150, 0.0
      %153 = vadd.xlane.f32.xlu0 %v152
      %v154 = vpop.xlane.xlu0 %153
      %v155 = vadd.f32 %v149, %v154
      %vm156 = vcmask 7168
      %157 = vst.msk [vmem:[#allocation4] sm:$0xff] %vm156, %v155
    $region29: #{tpu_custom_call.1} parent=1 // pred_fallthru
      _
    %v158 = vld [vmem:[#allocation2] sm:$0xff]
    %vm159 = vcmask 64512
    %v160 = vsel %vm159, %v129, -inf
    %161 = vmax.xlane.f32.xlu0 %v160
    %v162 = vpop.xlane.xlu0 %161
    %v163 = vmax.f32 %v158, %v162
    %v164 = vsub.f32 %v158, %v163
    %v165 = vmul.f32 %v164, 1.442695
    %v166 = vpow.pop %v165
    %v167 = vld [vmem:[#allocation3] sm:$0xff]
    %v168 = vmul.f32 %v166, %v167
    %170 = vset.pattern.permute.xlu0 0
    %171 = vperm.xlu0 %170, %v163
    %v172 = vpop.permute.xlu0 %171
    %v174 = vsub.f32 %v129, %v172
    %v175 = vmul.f32 %v174, 1.442695
    %v176 = vpow.pop %v175
    %v177 = vsel %vm159, %v176, 0.0
    %178 = vadd.xlane.f32.xlu0 %v177
    %v179 = vpop.xlane.xlu0 %178
    %v180 = vadd.f32 %v168, %v179
    %vm181 = vcmask 7168
    %182 = vst.msk [vmem:[#allocation3] sm:$0xff] %vm181, %v180
    %183 = vst.msk [vmem:[#allocation2] sm:$0xff] %vm181, %v163
    // Predicated region
    $region30: #{tpu_custom_call.1} parent=1 // pred_check
      %p184 = pneg %p40
    $region31: #{tpu_custom_call.1} parent=1 // pred_check_branch
      %186 = sbr.rel (%p184) target = $region33
    $region32: #{tpu_custom_call.1} parent=1 // pred_region
      %v187 = vld [vmem:[#allocation2] sm:$0xff]
      %v188 = vld [vmem:[#allocation3] sm:$0xff]
      %v189 = vlog2.pop %v188
      %v190 = vmul.f32 %v189, 0.6931472
      %v191 = vadd.f32 %v187, %v190
      %v192 = vld [vmem:[#allocation4] sm:$0xff]
      %v193 = vsub.f32 %v191, %v192
      %195 = vset.pattern.permute.xlu0 0
      %196 = vperm.xlu0 %195, %v193
      %v197 = vpop.permute.xlu0 %196
      %199 = vst [vmem:[#allocation11] sm:$0xff] %v197
    $region33: #{tpu_custom_call.1} parent=1 // pred_fallthru
      _
    // Predicated region
    $region34: #{tpu_custom_call.1} parent=1 // pred_check
      _
    $region35: #{tpu_custom_call.1} parent=1 // pred_check_branch
      %201 = sbr.rel (0) target = $region37
    $region36: #{tpu_custom_call.1} parent=1 // pred_region
      %s203 = ssub.s32 128, 128
      %204 = vsyncadd [#allocation8], %s203
      %s206 = sshll.u32 [#allocation11], 4
      %s207 = int_to_ptr.vmem [resolvable:$true] %s206
      %209 = dma.vmem_to_hbm [thread:$0]  %s207, 128, %s3, [#allocation8]
    $region37: #{tpu_custom_call.1} parent=1 // pred_fallthru
      _
    // Predicated region
    $region38: #{tpu_custom_call.1} parent=1 // pred_check
      _
    $region39: #{tpu_custom_call.1} parent=1 // pred_check_branch
      %211 = sbr.rel (0) target = $region41
    $region40: #{tpu_custom_call.1} parent=1 // pred_region
      %212 = dma.done [#allocation8], 128
    $region41: #{tpu_custom_call.1} parent=1 // pred_fallthru
      _
    %213 = vsyncpa [#allocation7], 1
    %214 = vsyncpa [#allocation10], 1
    %215 = vsyncpa [#allocation8], 1

</llo_original>
